<compile_context>
chip_gen: v7x
topology: tpu7x:2x2x1
jax: 0.10.0
libtpu: 0.0.40
codegen_flags: <defaults>
</compile_context>

<pallas_src>
import functools

import jax
import jax.numpy as jnp
from jax.experimental import pallas as pl
from jax.experimental.pallas import tpu as pltpu


def _round_up(x: int, m: int) -> int:
    return ((x + m - 1) // m) * m


# --------------------------- fused path (W % 8 == 0) ---------------------------

def _choose_bh_block(bh: int, w: int) -> int:
    """Number of (b, h) rows per grid step.

    Targets ~2048 input rows per step (HBM-bound; bigger tiles gain <1-2%), and
    prefers an even number of >=2 grid steps so the 'parallel' axis splits evenly
    across v7x's two TensorCores.  On single-core v5e/v6e the extra step is noise.
    """
    target_rows = 2048
    k = max(1, min(bh, target_rows // max(w, 1)))
    if bh > 1:
        nsteps = max(2, pl.cdiv(bh, k))
        if nsteps % 2:
            nsteps += 1
        k = max(1, pl.cdiv(bh, nsteps))
        for kk in range(k, 0, -1):          # best effort: make the step count even
            if pl.cdiv(bh, kk) % 2 == 0:
                k = kk
                break
    return k


def _fused_kernel(x_ref, w_ref, o_ref, *, k, w_pix, n_cols):
    # x_ref: (k*W, Cin)   w_ref: (p, Cin, p*Cout)   o_ref: (k, W, p*Cout)
    i = pl.program_id(1)                    # patch-row offset (innermost grid axis)
    w_i = w_ref[i]                          # (Cin, p*Cout): dynamic leading-dim index
    res = jnp.dot(x_ref[...], w_i, preferred_element_type=jnp.float32)
    # W % 8 == 0 on this path, so this reshape is a free sublane-aligned re-view.
    o_ref[...] = res.reshape(k, w_pix, n_cols).astype(o_ref.dtype)


def _unpatchify_fused(x2, w_perm, B, H, W, Cin, p, Cout):
    bh = B * H
    n_cols = p * Cout
    k = _choose_bh_block(bh, W)
    grid_m = pl.cdiv(bh, k)

    cost = pl.CostEstimate(
        flops=2 * bh * W * Cin * p * n_cols,
        transcendentals=0,
        bytes_accessed=4 * (bh * W * Cin + p * Cin * n_cols + bh * W * p * n_cols),
    )

    kernel = functools.partial(_fused_kernel, k=k, w_pix=W, n_cols=n_cols)
    y = pl.pallas_call(
        kernel,
        out_shape=jax.ShapeDtypeStruct((bh, p, W, n_cols), x2.dtype),
        grid_spec=pl.GridSpec(
            grid=(grid_m, p),
            in_specs=[
                # Activation: depends only on the row-block index -> stays resident
                # in VMEM across the p inner steps (read from HBM exactly once).
                pl.BlockSpec((k * W, Cin), lambda m, i: (m, 0)),
                # Tiny weight (p, Cin, p*Cout): resident for the whole kernel.
                pl.BlockSpec((p, Cin, n_cols), lambda m, i: (0, 0, 0)),
            ],
            # Block trailing dims (W, p*Cout) equal the full array dims -> legal for
            # any W / Cout; the p axis is indexed by the inner grid step.
            out_specs=pl.BlockSpec((k, None, W, n_cols), lambda m, i: (m, i, 0, 0)),
        ),
        compiler_params=pltpu.CompilerParams(
            dimension_semantics=("parallel", "arbitrary"),
        ),
        cost_estimate=cost,
    )(x2, w_perm)

    # (B*H, p, W, p*Cout) == (B, H, p, W, p, Cout) in memory -> free reshape.
    return y.reshape(B, H * p, W * p, Cout)


# ----------------------- fallback path (generic W) -----------------------------

def _choose_tm(M: int) -> int:
    TM_MAX = 2048
    nsteps = max(2, pl.cdiv(M, TM_MAX))
    if nsteps % 2:
        nsteps += 1
    tm = _round_up(pl.cdiv(M, nsteps), 8)
    return max(8, min(tm, _round_up(M, 8)))


def _matmul_kernel(x_ref, w_ref, o_ref):
    o_ref[...] = jnp.dot(
        x_ref[...], w_ref[...], preferred_element_type=jnp.float32
    ).astype(o_ref.dtype)


def _unpatchify_unfused(x2, w2, B, H, W, Cin, p, Cout):
    # Natural (un-padded) N = p*p*Cout output width: masked stores cost store-slot
    # throughput (plenty of slack here) but cut write traffic by 128/75 vs. padding.
    M = B * H * W
    N = p * p * Cout
    tm = _choose_tm(M)
    grid_m = pl.cdiv(M, tm)

    cost = pl.CostEstimate(
        flops=2 * M * Cin * N,
        transcendentals=0,
        bytes_accessed=4 * (M * Cin + Cin * N + M * N),
    )

    y = pl.pallas_call(
        _matmul_kernel,
        out_shape=jax.ShapeDtypeStruct((M, N), x2.dtype),
        grid_spec=pl.GridSpec(
            grid=(grid_m,),
            in_specs=[
                pl.BlockSpec((tm, Cin), lambda m: (m, 0)),
                pl.BlockSpec((Cin, N), lambda m: (0, 0)),
            ],
            out_specs=pl.BlockSpec((tm, N), lambda m: (m, 0)),
        ),
        compiler_params=pltpu.CompilerParams(dimension_semantics=("parallel",)),
        cost_estimate=cost,
    )(x2, w2)

    # TODO(synk): this scatter stays a separate XLA transpose pass for W % 8 != 0.
    y = y.reshape(B, H, W, p, p, Cout)                       # cols ordered (i, j, co)
    return jnp.transpose(y, (0, 1, 3, 2, 4, 5)).reshape(B, H * p, W * p, Cout)


# --------------------------------- wrapper --------------------------------------

def unpatchify_linear(x_hwc: jax.Array, weight: jax.Array, patch_size: int) -> jax.Array:
    """x_hwc: [B, H, W, C_in]; weight: [C_in, C_out, p, p] (ConvTranspose2d layout).

    Returns [B, H*p, W*p, C_out] -- same semantics as the PyTorch forward.
    """
    B, H, W, Cin = x_hwc.shape
    Cin_w, Cout, p, p2 = weight.shape
    assert Cin == Cin_w and p == patch_size and p2 == patch_size

    x2 = x_hwc.reshape(B * H * W, Cin)          # contiguous -> free

    if W % 8 == 0:
        # Weight -> (p_i, Cin, p_j*Cout): row i selects the patch-row weight slice.
        w_perm = jnp.transpose(weight, (2, 0, 3, 1)).reshape(p, Cin, p * Cout)
        return _unpatchify_fused(x2, w_perm, B, H, W, Cin, p, Cout)

    # Generic-W fallback: columns ordered (i, j, co).
    w2 = jnp.transpose(weight, (0, 2, 3, 1)).reshape(Cin, p * p * Cout)
    return _unpatchify_unfused(x2, w2, B, H, W, Cin, p, Cout)


def _reference(x_hwc, weight):
    # out[b, h*p+i, w*p+j, co] = sum_ci x[b,h,w,ci] * W[ci,co,i,j]
    y = jnp.einsum("bhwc,coij->bhiwjo", x_hwc, weight)
    B, H, p, W, _, Cout = y.shape
    return y.reshape(B, H * p, W * p, Cout)


if __name__ == "__main__":
    key = jax.random.PRNGKey(0)
    kx, kw, kx2 = jax.random.split(key, 3)

    patch_size, latent_dim, Cout = 5, 32, 3

    # ConvTranspose2d weight layout: [in_channels, out_channels, kH, kW]
    weight = jax.random.normal(
        kw, (latent_dim, Cout, patch_size, patch_size), dtype=jnp.float32
    ) * 0.05

    # Path 1: fused scatter (W multiple of 8).
    B, H, W = 2, 4, 8
    x = jax.random.normal(kx, (B, H, W, latent_dim), dtype=jnp.float32)
    out = jax.block_until_ready(unpatchify_linear(x, weight, patch_size))
    assert out.shape == (B, H * patch_size, W * patch_size, Cout), out.shape
    ref = _reference(x, weight)
    assert jnp.allclose(out, ref, atol=2e-4, rtol=2e-4), "fused path mismatch"

    # Path 2: generic-W fallback (un-padded matmul + XLA scatter).
    B2, H2, W2 = 2, 3, 5
    x_b = jax.random.normal(kx2, (B2, H2, W2, latent_dim), dtype=jnp.float32)
    out2 = jax.block_until_ready(unpatchify_linear(x_b, weight, patch_size))
    assert out2.shape == (B2, H2 * patch_size, W2 * patch_size, Cout), out2.shape
    ref2 = _reference(x_b, weight)
    assert jnp.allclose(out2, ref2, atol=2e-4, rtol=2e-4), "fallback path mismatch"

    print("KERNEL_OK")
</pallas_src>

<mosaic_0001>
module attributes {stable_mosaic.version = 11 : i64} {
  func.func @_fused_kernel(%arg0: i32, %arg1: i32, %arg2: memref<32x32xf32, #tpu.memory_space<vmem>>, %arg3: memref<5x32x15xf32, #tpu.memory_space<vmem>>, %arg4: memref<4x1x8x15xf32, #tpu.memory_space<vmem>>) attributes {dimension_semantics = [#tpu.dimension_semantics<parallel>, #tpu.dimension_semantics<arbitrary>], iteration_bounds = array<i64: 2, 5>, scalar_prefetch = 0 : i64, scratch_operands = 0 : i64, tpu.core_type = #tpu.core_type<tc>, window_params = [{transform_indices = @transform_0, window_bounds = array<i64: 32, 32>}, {pipeline_mode = #tpu.pipeline_mode<synchronous>, transform_indices = @transform_1, window_bounds = array<i64: 5, 32, 15>}, {transform_indices = @transform_2, window_bounds = array<i64: 4, 1, 8, 15>}]} {
    %0 = arith.index_cast %arg1 : i32 to index
    %c0 = arith.constant 0 : index
    %c0_0 = arith.constant 0 : index
    %1 = vector.load %arg3[%0, %c0, %c0_0] : memref<5x32x15xf32, #tpu.memory_space<vmem>>, vector<1x32x15xf32>
    %2 = vector.shape_cast %1 : vector<1x32x15xf32> to vector<32x15xf32>
    %c0_1 = arith.constant 0 : index
    %c0_2 = arith.constant 0 : index
    %3 = vector.load %arg2[%c0_1, %c0_2] : memref<32x32xf32, #tpu.memory_space<vmem>>, vector<32x32xf32>
    %cst = arith.constant dense<0.000000e+00> : vector<32x15xf32>
    %4 = tpu.matmul %3, %2, %cst {dimension_numbers = #tpu.dot_dimension_numbers<[1], [0], [0], [1], [0, 0, 1, 1], [], []>} : vector<32x32xf32>, vector<32x15xf32>, vector<32x15xf32> -> vector<32x15xf32>
    %5 = vector.shape_cast %4 : vector<32x15xf32> to vector<4x8x15xf32>
    %c0_3 = arith.constant 0 : index
    %c0_4 = arith.constant 0 : index
    %c0_5 = arith.constant 0 : index
    %c0_6 = arith.constant 0 : index
    %6 = vector.load %arg4[%c0_3, %c0_4, %c0_5, %c0_6] : memref<4x1x8x15xf32, #tpu.memory_space<vmem>>, vector<4x1x8x15xf32>
    %7 = vector.shape_cast %6 : vector<4x1x8x15xf32> to vector<4x8x15xf32>
    %8 = vector.shape_cast %5 : vector<4x8x15xf32> to vector<4x1x8x15xf32>
    tpu.vector_store %arg4[%c0_3, %c0_4, %c0_5, %c0_6], %8 {strides = array<i32>} : memref<4x1x8x15xf32, #tpu.memory_space<vmem>>, vector<4x1x8x15xf32>,
    return
  }
  func.func @transform_0(%arg0: i32, %arg1: i32) -> (i32, i32) {
    %c0_i32 = arith.constant 0 : i32
    %c0_i32_0 = arith.constant 0 : i32
    return %arg0, %c0_i32 : i32, i32
  }
  func.func @transform_1(%arg0: i32, %arg1: i32) -> (i32, i32, i32) {
    %c0_i32 = arith.constant 0 : i32
    %c0_i32_0 = arith.constant 0 : i32
    %c0_i32_1 = arith.constant 0 : i32
    %c0_i32_2 = arith.constant 0 : i32
    return %c0_i32, %c0_i32_0, %c0_i32_1 : i32, i32, i32
  }
  func.func @transform_2(%arg0: i32, %arg1: i32) -> (i32, i32, i32, i32) {
    %c0_i32 = arith.constant 0 : i32
    %c0_i32_0 = arith.constant 0 : i32
    %c0_i32_1 = arith.constant 0 : i32
    return %arg0, %arg1, %c0_i32, %c0_i32_0 : i32, i32, i32, i32
  }
}

</mosaic_0001>

<llo_original>
// kernel: tpu_custom_call.1
$region0: #{tpu_custom_call.1}
  #allocation0 [shape = 'u32[]', space=smem, size = 0x4, offset = 0x4, fixed_abs, tag = 'smem constant byte address 0x4 - core index']
  #allocation1 [shape = 'u32[144,128]{1,0:T(1,128)}', space=vmem, size = 0x12000, scoped, tag = 'internal scratch']
  %s0 = inlined_call_operand.vmem [shape: f32[64,32], index: 0, kind: input, shape index: {}]
  %s1 = inlined_call_operand.vmem [shape: f32[5,32,15], index: 1, kind: input, shape index: {}]
  %s2 = inlined_call_operand.hbm [shape: f32[8,5,8,15], index: 2, kind: output, shape index: {}]
  %s3 = sld [smem:[#allocation0]]
  $region41: #{tpu_custom_call.1} parent=0
    _
  %s5 = ssub.s32 1, %s3
  %s6 = scalar_select 0, %s5, %s3
  $region1: #{tpu_custom_call.1} parent=0
    #allocation2 [shape = 'u8[32768]{0}', space=vmem, size = 0x8000, scoped, tag = 'output window, operand 0']
    #allocation3 [shape = 's32[2]{0}', space=sflag, size = 0x8, scoped, tag = 'scoped memory for tpu_custom_call.1']
    %7 = vsyncpa [#allocation3], 0
    %s8 = scalar_lea.sflag [#allocation3], 1
    %9 = vsyncpa %s8, 0
    loop: start=0, step=1, limit=12
    $region2: #{tpu_custom_call.1} parent=1 // loop_pre_header
      _
    $region3: #{tpu_custom_call.1} parent=1 // loop_header
      %s11 = sphi 0, %s15
      %p12 = scmp.ge.s32.totalorder %s11, 12
      %s18 = sphi 0, %s30
      %s19 = sphi 0, %s26
      %s20 = sphi 0, %s18
      %s21 = sphi 0, %s19
      %s22 = sphi 0, %s20
      %s23 = sphi 0, %s21
      %s33 = sphi 0, %s35
      %s36 = sphi 0, %s33
      %s37 = sphi 0, %s36
      %s53 = sphi 0, %s37
      %s57 = sphi 0, %s57
      %s59 = sphi 0, %s57
      %s60 = sphi 0, %s59
      %s74 = sphi 0, %s60
      %s82 = sphi 0, %s84
      %s85 = sphi 0, %s82
      %s86 = sphi 0, %s85
      %s102 = sphi 0, %s86
    $region4: #{tpu_custom_call.1} parent=1 // loop_header_branch
      %14 = sbr.rel (%p12) target = $region8
    $region5: #{tpu_custom_call.1} parent=1 // loop_body
      %s16 = ssub.s32 %s11, 1
      %s17 = ssub.s32 %s11, 2
      %s24 = sadd.s32 1, %s19
      %p25 = scmp.ge.s32.totalorder %s24, 5
      %s26 = scalar_select %p25, 0, %s24
      %s27 = sadd.s32 1, %s18
      %s28 = scalar_select %p25, %s27, %s18
      %p29 = scmp.ge.s32.totalorder %s28, 2
      %s30 = scalar_select %p29, 0, %s28
      %s31 = ssub.s32 %s18, %s30
      %p32 = scmp.eq.s32.totalorder %s31, 0
      %s34 = sadd.s32 %s33, 1
      %s35 = scalar_select %p32, %s33, %s34
      %p38 = pneg %p32
      %p39 = scmp.eq.s32.totalorder %s11, 9
      %p40 = por %p38, %p39
      %p41 = scmp.ne.s32.totalorder %s33, %s36
      %p42 = scmp.eq.s32.totalorder %s11, 0
      %p43 = por %p41, %p42
      %p44 = scmp.ne.s32.totalorder %s33, %s36
      %p45 = scmp.eq.s32.totalorder %s16, 9
      %p46 = por %p44, %p45
      %p47 = scmp.ne.s32.totalorder %s36, %s37
      %p48 = scmp.eq.s32.totalorder %s16, 0
      %p49 = por %p47, %p48
      %p50 = scmp.ne.s32.totalorder %s36, %s37
      %p51 = scmp.eq.s32.totalorder %s17, 9
      %p52 = por %p50, %p51
      %p54 = scmp.ne.s32.totalorder %s37, %s53
      %p55 = scmp.eq.s32.totalorder %s17, 0
      %p56 = por %p54, %p55
      %s58 = sadd.s32 %s57, 1
      %p61 = scmp.eq.s32.totalorder %s11, 9
      %p62 = scmp.ne.s32.totalorder %s57, %s59
      %p63 = scmp.eq.s32.totalorder %s11, 0
      %p64 = por %p62, %p63
      %p65 = scmp.ne.s32.totalorder %s57, %s59
      %p66 = scmp.eq.s32.totalorder %s16, 9
      %p67 = por %p65, %p66
      %p68 = scmp.ne.s32.totalorder %s59, %s60
      %p69 = scmp.eq.s32.totalorder %s16, 0
      %p70 = por %p68, %p69
      %p71 = scmp.ne.s32.totalorder %s59, %s60
      %p72 = scmp.eq.s32.totalorder %s17, 9
      %p73 = por %p71, %p72
      %p75 = scmp.ne.s32.totalorder %s60, %s74
      %p76 = scmp.eq.s32.totalorder %s17, 0
      %p77 = por %p75, %p76
      %s78 = ssub.s32 %s18, %s30
      %s79 = ssub.s32 %s19, %s26
      %s80 = sor.u32 %s78, %s79
      %p81 = scmp.eq.s32.totalorder %s80, 0
      %s83 = sadd.s32 %s82, 1
      %s84 = scalar_select %p81, %s82, %s83
      %p87 = pneg %p81
      %p88 = scmp.eq.s32.totalorder %s11, 9
      %p89 = por %p87, %p88
      %p90 = scmp.ne.s32.totalorder %s82, %s85
      %p91 = scmp.eq.s32.totalorder %s11, 0
      %p92 = por %p90, %p91
      %p93 = scmp.ne.s32.totalorder %s82, %s85
      %p94 = scmp.eq.s32.totalorder %s16, 9
      %p95 = por %p93, %p94
      %p96 = scmp.ne.s32.totalorder %s85, %s86
      %p97 = scmp.eq.s32.totalorder %s16, 0
      %p98 = por %p96, %p97
      %p99 = scmp.ne.s32.totalorder %s85, %s86
      %p100 = scmp.eq.s32.totalorder %s17, 9
      %p101 = por %p99, %p100
      %p103 = scmp.ne.s32.totalorder %s86, %s102
      %p104 = scmp.eq.s32.totalorder %s17, 0
      %p105 = por %p103, %p104
      %p106 = scmp.le.s32.totalorder 1, %s11
      %p107 = scmp.lt.s32.totalorder %s11, 11
      %p108 = pnand %p106, %p107
      %p109 = pneg %p108
      // Predicated region
      $region9: #{tpu_custom_call.1} parent=5 // pred_check
        _
      $region10: #{tpu_custom_call.1} parent=5 // pred_check_branch
        %111 = sbr.rel (%p108) target = $region12
      $region11: #{tpu_custom_call.1} parent=5 // pred_region
        %s112 = ssub.s32 %s11, 1
        // Predicated region
        $region13: #{tpu_custom_call.1} parent=11 // pred_check
          %p113 = pneg %p70
        $region14: #{tpu_custom_call.1} parent=11 // pred_check_branch
          %115 = sbr.rel (%p113) target = $region16
        $region15: #{tpu_custom_call.1} parent=11 // pred_region
          _
        $region16: #{tpu_custom_call.1} parent=11 // pred_fallthru
          _
      $region12: #{tpu_custom_call.1} parent=5 // pred_fallthru
        _
      %p116 = scmp.lt.s32.totalorder %s11, 10
      // Predicated region
      $region17: #{tpu_custom_call.1} parent=5 // pred_check
        %p117 = pneg %p116
      $region18: #{tpu_custom_call.1} parent=5 // pred_check_branch
        %119 = sbr.rel (%p117) target = $region20
      $region19: #{tpu_custom_call.1} parent=5 // pred_region
        // Predicated region
        $region21: #{tpu_custom_call.1} parent=19 // pred_check
          %p120 = pneg %p43
        $region22: #{tpu_custom_call.1} parent=19 // pred_check_branch
          %122 = sbr.rel (%p120) target = $region24
        $region23: #{tpu_custom_call.1} parent=19 // pred_region
          %s123 = smul.u32 4, %s18
          %p124 = scmp.lt.s32.totalorder %s123, 7
          %s125 = scalar_select %p124, %s123, 7
          %s126 = smul.addr %s125, 8
          %s127 = scalar_lea.vmem %s0, %s126
          %s128 = smul.u32 4, %s18
        $region24: #{tpu_custom_call.1} parent=19 // pred_fallthru
          _
      $region20: #{tpu_custom_call.1} parent=5 // pred_fallthru
        _
      %p129 = scmp.le.s32.totalorder 1, %s11
      %p130 = scmp.lt.s32.totalorder %s11, 11
      %p131 = pnand %p129, %p130
      %p132 = pneg %p131
      // Predicated region
      $region25: #{tpu_custom_call.1} parent=5 // pred_check
        _
      $region26: #{tpu_custom_call.1} parent=5 // pred_check_branch
        %134 = sbr.rel (%p131) target = $region28
      $region27: #{tpu_custom_call.1} parent=5 // pred_region
        %s135 = ssub.s32 %s11, 1
        %s136 = smul.u32 4, %s20
        %p137 = scmp.lt.s32.totalorder %s136, 7
        %s138 = scalar_select %p137, %s136, 7
        %s139 = smul.addr %s138, 8
        %s140 = scalar_lea.vmem %s0, %s139
        %p141 = pneg %p49
        %p142 = pneg %p46
        %p143 = pneg %p70
        %p144 = pneg %p67
        %p145 = pneg %p98
        %p146 = pneg %p95
        %s147 = sand.u32 %s85, 1
        %s148 = scalar_lea.sflag [#allocation3], %s147
        %s149 = sand.u32 %s85, 1
        %s150 = smul.addr %s149, 32
        %s151 = scalar_lea.vmem [#allocation2], %s150
        %s152 = smul.u32 4, %s20
        %p153 = scmp.lt.s32.totalorder %s152, 7
        %s154 = scalar_select %p153, %s152, 7
        %s155 = smul.addr %s154, 8
        %s156 = scalar_lea.vmem %s0, %s155
        %s157 = smul.u32 4, %s20
        %s158 = smul.u32 4, %s20
        %s159 = smul.u32 %s21, 32
        %s160 = scalar_lea.vmem %s1, %s159
        %v161 = vld [vmem:[%s160] sm:$0xff]
        %v162 = vld [vmem:[%s160 + $0x8] sm:$0xff]
        %v163 = vld [vmem:[%s160 + $0x10] sm:$0xff]
        %v164 = vld [vmem:[%s160 + $0x18] sm:$0xff]
        %v165 = vld [vmem:[%s156] sm:$0xff]
        %v166 = vld [vmem:[%s156 + $0x8] sm:$0xff]
        %v167 = vld [vmem:[%s156 + $0x10] sm:$0xff]
        %v168 = vld [vmem:[%s156 + $0x18] sm:$0xff]
        %vm169 = vcmask 261120
        %v171 = vsel %vm169, %v165, 0
        %v174 = vsel %vm169, %v166, 0
        %v177 = vsel %vm169, %v167, 0
        %v180 = vsel %vm169, %v168, 0
        %182 = vmatprep.subr.mxu0 0.0
        %183 = vmatpush1.msra.mxu0 %v161
        %184 = vmatprep.subr.mxu0 0.0
        %185 = vmatpush1.msra.mxu0 %v162
        %186 = vmatprep.subr.mxu0 0.0
        %187 = vmatpush1.msra.mxu0 %v163
        %188 = vmatprep.subr.mxu0 0.0
        %189 = vmatpush1.msra.mxu0 %v164
        %190 = vmatprep.subr.mxu0 0.0
        %191 = vmatpush1.msra.mxu0 0.0
        %192 = vmatprep.subr.mxu0 0.0
        %193 = vmatpush1.msra.mxu0 0.0
        %194 = vmatprep.subr.mxu0 0.0
        %195 = vmatpush1.msra.mxu0 0.0
        %196 = vmatprep.subr.mxu0 0.0
        %197 = vmatpush1.msra.mxu0 0.0
        %198 = vmatprep.subr.mxu0 0.0
        %199 = vmatpush1.msra.mxu0 0.0
        %200 = vmatprep.subr.mxu0 0.0
        %201 = vmatpush1.msra.mxu0 0.0
        %202 = vmatprep.subr.mxu0 0.0
        %203 = vmatpush1.msra.mxu0 0.0
        %204 = vmatprep.subr.mxu0 0.0
        %205 = vmatpush1.msra.mxu0 0.0
        %206 = vmatprep.subr.mxu0 0.0
        %207 = vmatpush1.msra.mxu0 0.0
        %208 = vmatprep.subr.mxu0 0.0
        %209 = vmatpush1.msra.mxu0 0.0
        %210 = vmatprep.subr.mxu0 0.0
        %211 = vmatpush1.msra.mxu0 0.0
        %212 = vmatprep.subr.mxu0 0.0
        %213 = vmatpush1.msra.mxu0 0.0
        %214 = vmatprep.subr.mxu0 0.0
        %215 = vmatpush1.msra.mxu0 0.0
        %216 = vmatprep.subr.mxu0 0.0
        %217 = vmatpush1.msra.mxu0 0.0
        %218 = vmatprep.subr.mxu0 0.0
        %219 = vmatpush1.msra.mxu0 0.0
        %220 = vmatprep.subr.mxu0 0.0
        %221 = vmatpush1.msra.mxu0 0.0
        %222 = vmatprep.subr.mxu0 0.0
        %223 = vmatpush1.msra.mxu0 0.0
        %224 = vmatprep.subr.mxu0 0.0
        %225 = vmatpush1.msra.mxu0 0.0
        %226 = vmatprep.subr.mxu0 0.0
        %227 = vmatpush1.msra.mxu0 0.0
        %228 = vmatprep.subr.mxu0 0.0
        %229 = vmatpush1.msra.mxu0 0.0
        %230 = vmatprep.subr.mxu0 0.0
        %231 = vmatpush1.msra.mxu0 0.0
        %232 = vmatprep.subr.mxu0 0.0
        %233 = vmatpush1.msra.mxu0 0.0
        %234 = vmatprep.subr.mxu0 0.0
        %235 = vmatpush1.msra.mxu0 0.0
        %236 = vmatprep.subr.mxu0 0.0
        %237 = vmatpush1.msra.mxu0 0.0
        %238 = vmatprep.subr.mxu0 0.0
        %239 = vmatpush1.msra.mxu0 0.0
        %240 = vmatprep.subr.mxu0 0.0
        %241 = vmatpush1.msra.mxu0 0.0
        %242 = vmatprep.subr.mxu0 0.0
        %243 = vmatpush1.msra.mxu0 0.0
        %244 = vmatprep.subr.mxu0 0.0
        %245 = vmatpush1.msra.mxu0 0.0
        %246 = vmatprep.mubr.f32.mxu0 0.0
        %247 = vmatmul.mubr.f32.gmra.mrb[0].mxu0 %v171
        %v248 = vpop.f32.mrb[0].mxu0
        %v249 = vadd.f32 0.0, %v248
        %v250 = vpop.f32.mrb[0].mxu0
        %251 = vmatprep.mubr.f32.mxu0 0.0
        %252 = vmatmul.mubr.f32.gmra.mrb[0].mxu0 %v174
        %v253 = vpop.f32.mrb[0].mxu0
        %v254 = vadd.f32 0.0, %v253
        %v255 = vpop.f32.mrb[0].mxu0
        %256 = vmatprep.mubr.f32.mxu0 0.0
        %257 = vmatmul.mubr.f32.gmra.mrb[0].mxu0 %v177
        %v258 = vpop.f32.mrb[0].mxu0
        %v259 = vadd.f32 0.0, %v258
        %v260 = vpop.f32.mrb[0].mxu0
        %261 = vmatprep.mubr.f32.mxu0 0.0
        %262 = vmatmul.mubr.f32.gmra.mrb[0].mxu0 %v180
        %v263 = vpop.f32.mrb[0].mxu0
        %v264 = vadd.f32 0.0, %v263
        %v265 = vpop.f32.mrb[0].mxu0
        %266 = vdwg.mxu0
        %vm267 = vcmask 121856
        %268 = vst.msk [vmem:[%s151] sm:$0xff] %vm267, %v249
        %269 = vst.msk [vmem:[%s151 + $0x8] sm:$0xff] %vm267, %v254
        %270 = vst.msk [vmem:[%s151 + $0x10] sm:$0xff] %vm267, %v259
        %271 = vst.msk [vmem:[%s151 + $0x18] sm:$0xff] %vm267, %v264
        %s272 = sand.u32 %s85, 1
        %s273 = scalar_lea.sflag [#allocation3], %s272
        %s274 = sand.u32 %s85, 1
        %s275 = smul.addr %s274, 32
        %s276 = scalar_lea.vmem [#allocation2], %s275
        // Predicated region
        $region29: #{tpu_custom_call.1} parent=27 // pred_check
          %p277 = pneg %p95
        $region30: #{tpu_custom_call.1} parent=27 // pred_check_branch
          %279 = sbr.rel (%p277) target = $region32
        $region31: #{tpu_custom_call.1} parent=27 // pred_region
          %s280 = smul.u32 4, %s20
          %s282 = ssub.s32 512, 512
          %283 = vsyncadd %s273, %s282
          %s284 = smul.addr %s280, 5
          %s285 = sadd.s32 %s21, %s284
          %s286 = smul.addr %s285, 128
          %s287 = scalar_lea.hbm %s2, %s286
          %s288 = sshll.u32 %s276, 4
          %s289 = int_to_ptr.vmem [resolvable:$true] %s288
          %294 = dma.vmem_to_hbm [thread:$0]  %s289, 512, %s287, %s273, 128, 640, 8
        $region32: #{tpu_custom_call.1} parent=27 // pred_fallthru
          _
      $region28: #{tpu_custom_call.1} parent=5 // pred_fallthru
        _
      %p295 = scmp.le.s32.totalorder 2, %s11
      // Predicated region
      $region33: #{tpu_custom_call.1} parent=5 // pred_check
        %p296 = pneg %p295
      $region34: #{tpu_custom_call.1} parent=5 // pred_check_branch
        %298 = sbr.rel (%p296) target = $region36
      $region35: #{tpu_custom_call.1} parent=5 // pred_region
        %s299 = ssub.s32 %s11, 2
        // Predicated region
        $region37: #{tpu_custom_call.1} parent=35 // pred_check
          %p300 = pneg %p101
        $region38: #{tpu_custom_call.1} parent=35 // pred_check_branch
          %302 = sbr.rel (%p300) target = $region40
        $region39: #{tpu_custom_call.1} parent=35 // pred_region
          %s303 = sand.u32 %s86, 1
          %s304 = scalar_lea.sflag [#allocation3], %s303
          %s305 = sand.u32 %s86, 1
          %s306 = smul.addr %s305, 32
          %s307 = scalar_lea.vmem [#allocation2], %s306
          %308 = dma.done %s304, 512
        $region40: #{tpu_custom_call.1} parent=35 // pred_fallthru
          _
      $region36: #{tpu_custom_call.1} parent=5 // pred_fallthru
        _
    $region6: #{tpu_custom_call.1} parent=1 // loop_footer
      %s15 = sadd.s32 1, %s11
    $region7: #{tpu_custom_call.1} parent=1 // loop_footer_branch
      %10 = sbr.rel target = $region3
    $region8: #{tpu_custom_call.1} parent=1 // loop_exit
      _
    %309 = vsyncpa [#allocation3], 1
    %s310 = scalar_lea.sflag [#allocation3], 1
    %311 = vsyncpa %s310, 1

</llo_original>
